<compile_context>
chip_gen: v7x
topology: tpu7x:2x2x1
jax: 0.10.0
libtpu: 0.0.40
codegen_flags: <defaults>
</compile_context>

<pallas_src>
import jax
import jax.numpy as jnp
from jax.experimental import pallas as pl
from jax.experimental.pallas import tpu as pltpu


def _copy_kernel(x_ref, o_ref):
    # Pure lane-dense streaming copy of one tile (HBM-roofline, MXU/VPU idle).
    o_ref[...] = x_ref[...]


def _tile_budget():
    """(max_tile_bytes_per_buffer, vmem_limit_bytes_or_None) per chip gen."""
    try:
        kind = jax.devices()[0].device_kind.lower()
    except Exception:
        kind = ""
    if "v7" in kind or "7x" in kind:
        # ~3.2 TB/s HBM: bigger tiles amortize the ~0.35us/grid-step overhead.
        # 4 buffers (in+out double buffered) x 8 MiB = 32 MiB < 64 MiB per-TC
        # VMEM; raise the scoped limit since the 32 MiB default is tight.
        return 8 * 1024 * 1024, 48 * 1024 * 1024
    # v5e / v6e: 2 MiB is already past the measured roofline knee and is safe
    # under the default scoped VMEM (16 / 32 MiB) with double buffering.
    return 2 * 1024 * 1024, None


def _materialized_copy(x2, total, itemsize):
    """Copy a 2-D lane-dense view of the flat data at the HBM roofline."""
    max_tile_bytes, vmem_limit = _tile_budget()
    R, W = x2.shape

    # Lane (last-dim) tile: take the full row when it fits the byte budget
    # (one fully contiguous HBM slab per DMA); otherwise a multiple of 128
    # (masked vst only on the edge column).
    row_budget = max(1, max_tile_bytes // max(1, min(R, 8)))
    if W * itemsize <= row_budget:
        TN = W
    else:
        TN = max(128, (max_tile_bytes // (8 * itemsize)) // 128 * 128)

    # Sublane (row) tile: full dim or a multiple of 8, within the budget.
    tm_cap = max(1, max_tile_bytes // (TN * itemsize))
    if R <= tm_cap:
        TM = R                      # full dim is always legal
    elif R < 8:
        TM = R                      # safety fallback (full dim)
    else:
        TM = max(8, (min(R, tm_cap) // 8) * 8)

    grid = (pl.cdiv(R, TM), pl.cdiv(W, TN))

    return pl.pallas_call(
        _copy_kernel,
        out_shape=jax.ShapeDtypeStruct((R, W), x2.dtype),
        grid=grid,
        in_specs=[pl.BlockSpec((TM, TN), lambda i, j: (i, j))],
        out_specs=pl.BlockSpec((TM, TN), lambda i, j: (i, j)),
        compiler_params=pltpu.CompilerParams(
            dimension_semantics=("parallel", "parallel"),
            vmem_limit_bytes=vmem_limit,
        ),
        cost_estimate=pl.CostEstimate(
            flops=0,
            transcendentals=0,
            bytes_accessed=2 * total * itemsize,
        ),
    )(x2)


def flatten(x, materialize=False):
    """Pallas equivalent of torch Flatten: x.view(x.size(0), -1).

    By default this is a metadata-only reshape (what .view does on a
    contiguous tensor — zero HBM traffic).  Set materialize=True to force an
    explicit HBM->HBM copy through the Pallas streaming-copy kernel.
    """
    B = x.shape[0]
    rest = 1
    for d in x.shape[1:]:
        rest *= d

    if not materialize:
        # Biggest win per the perf review: flatten is metadata-only.
        return x.reshape(B, rest)

    total = B * rest
    itemsize = jnp.dtype(x.dtype).itemsize
    max_tile_bytes, _ = _tile_budget()

    if total % 128 == 0:
        # Decouple the copy tiling from (B, rest): stream over a flat
        # (total // W, W) factorization with W the largest multiple of 128
        # that divides total and keeps a row within the per-row budget, so
        # small batch sizes still get full lane-dense tiles.  The reshapes on
        # either side are metadata-only.
        cap_w = max(128, (max_tile_bytes // (8 * itemsize)) // 128 * 128)
        q = total // 128
        d = max(1, min(q, cap_w // 128))
        while q % d != 0:
            d -= 1
        W = 128 * d
        out = _materialized_copy(x.reshape(total // W, W), total, itemsize)
    else:
        # Unaligned total: copy the (B, rest) view directly (TN selection
        # above keeps the tile within the VMEM budget even for large rest).
        out = _materialized_copy(x.reshape(B, rest), total, itemsize)

    return out.reshape(B, rest)


if __name__ == "__main__":
    key = jax.random.PRNGKey(0)
    # Small NCHW input consistent with how Flatten is used after conv stacks.
    B, C, H, W = 2, 4, 16, 16
    x = jax.random.normal(key, (B, C, H, W), dtype=jnp.float32)

    y_ref = x.reshape(B, -1)

    # Default path: metadata-only reshape (== torch .view semantics).
    y_view = jax.block_until_ready(flatten(x))
    assert y_view.shape == (B, C * H * W), y_view.shape
    assert jnp.array_equal(y_view, y_ref), "flatten (view) mismatch"

    # Forced materialized copy: exercises the Pallas streaming-copy kernel.
    y_copy = jax.block_until_ready(flatten(x, materialize=True))
    assert y_copy.shape == (B, C * H * W), y_copy.shape
    assert jnp.array_equal(y_copy, y_ref), "flatten (pallas copy) mismatch"

    print("KERNEL_OK")
</pallas_src>

<mosaic_0001>
module attributes {stable_mosaic.version = 11 : i64} {
  func.func @_copy_kernel(%arg0: i32, %arg1: i32, %arg2: memref<1x2048xf32, #tpu.memory_space<vmem>>, %arg3: memref<1x2048xf32, #tpu.memory_space<vmem>>) attributes {dimension_semantics = [#tpu.dimension_semantics<parallel>, #tpu.dimension_semantics<parallel>], iteration_bounds = array<i64: 1, 1>, scalar_prefetch = 0 : i64, scratch_operands = 0 : i64, tpu.core_type = #tpu.core_type<tc>, window_params = [{transform_indices = @transform_0, window_bounds = array<i64: 1, 2048>}, {transform_indices = @transform_1, window_bounds = array<i64: 1, 2048>}]} {
    %c0 = arith.constant 0 : index
    %c0_0 = arith.constant 0 : index
    %0 = vector.load %arg2[%c0, %c0_0] : memref<1x2048xf32, #tpu.memory_space<vmem>>, vector<1x2048xf32>
    %c0_1 = arith.constant 0 : index
    %c0_2 = arith.constant 0 : index
    %1 = vector.load %arg3[%c0_1, %c0_2] : memref<1x2048xf32, #tpu.memory_space<vmem>>, vector<1x2048xf32>
    tpu.vector_store %arg3[%c0_1, %c0_2], %0 {strides = array<i32>} : memref<1x2048xf32, #tpu.memory_space<vmem>>, vector<1x2048xf32>,
    return
  }
  func.func @transform_0(%arg0: i32, %arg1: i32) -> (i32, i32) {
    %c0_i32 = arith.constant 0 : i32
    return %arg0, %arg1 : i32, i32
  }
  func.func @transform_1(%arg0: i32, %arg1: i32) -> (i32, i32) {
    %c0_i32 = arith.constant 0 : i32
    return %arg0, %arg1 : i32, i32
  }
}

</mosaic_0001>

<llo_original>
// kernel: tpu_custom_call.1
$region0: #{tpu_custom_call.1}
  #allocation0 [shape = 'u32[]', space=smem, size = 0x4, offset = 0x4, fixed_abs, tag = 'smem constant byte address 0x4 - core index']
  #allocation1 [shape = 'u32[144,128]{1,0:T(1,128)}', space=vmem, size = 0x12000, scoped, tag = 'internal scratch']
  %s0 = inlined_call_operand.hbm [shape: f32[1,2048], index: 0, kind: input, shape index: {}]
  %s1 = inlined_call_operand.hbm [shape: f32[1,2048], index: 1, kind: output, shape index: {}]
  %s2 = sld [smem:[#allocation0]]
  $region18: #{tpu_custom_call.1} parent=0
    _
  %s4 = ssub.s32 1, %s2
  %s5 = scalar_select 0, %s4, %s2
  $region1: #{tpu_custom_call.1} parent=0
    #allocation2 [shape = 'u8[8192]{0}', space=vmem, size = 0x2000, scoped, tag = 'input window, operand 0, single buffered']
    #allocation3 [shape = 's32[1]{0}', space=sflag, size = 0x4, scoped, tag = 'scoped memory for tpu_custom_call.1']
    #allocation4 [shape = 's32[1]{0}', space=sflag, size = 0x4, scoped, tag = 'scoped memory for tpu_custom_call.1']
    #allocation5 [shape = 'u8[8192]{0}', space=vmem, size = 0x2000, scoped, tag = 'output window, operand 0, single buffered']
    %6 = vsyncpa [#allocation3], 0
    %7 = vsyncpa [#allocation4], 0
    // Predicated region
    $region2: #{tpu_custom_call.1} parent=1 // pred_check
      _
    $region3: #{tpu_custom_call.1} parent=1 // pred_check_branch
      %9 = sbr.rel (0) target = $region5
    $region4: #{tpu_custom_call.1} parent=1 // pred_region
      %s11 = ssub.s32 256, 256
      %12 = vsyncadd [#allocation3], %s11
      %s14 = sshll.u32 [#allocation2], 4
      %s15 = int_to_ptr.vmem [resolvable:$true] %s14
      %17 = dma.hbm_to_vmem [thread:$0]  %s0, 256, %s15, [#allocation3]
    $region5: #{tpu_custom_call.1} parent=1 // pred_fallthru
      _
    // Predicated region
    $region6: #{tpu_custom_call.1} parent=1 // pred_check
      _
    $region7: #{tpu_custom_call.1} parent=1 // pred_check_branch
      %19 = sbr.rel (0) target = $region9
    $region8: #{tpu_custom_call.1} parent=1 // pred_region
      %20 = dma.done [#allocation3], 256
    $region9: #{tpu_custom_call.1} parent=1 // pred_fallthru
      _
    %v21 = vld [vmem:[#allocation2] sm:$0xff]
    %v22 = vld [vmem:[#allocation2 + $0x8] sm:$0xff]
    %23 = vst [vmem:[#allocation5] sm:$0xff] %v21
    %24 = vst [vmem:[#allocation5 + $0x8] sm:$0xff] %v22
    // Predicated region
    $region10: #{tpu_custom_call.1} parent=1 // pred_check
      _
    $region11: #{tpu_custom_call.1} parent=1 // pred_check_branch
      %26 = sbr.rel (0) target = $region13
    $region12: #{tpu_custom_call.1} parent=1 // pred_region
      %s28 = ssub.s32 256, 256
      %29 = vsyncadd [#allocation4], %s28
      %s31 = sshll.u32 [#allocation5], 4
      %s32 = int_to_ptr.vmem [resolvable:$true] %s31
      %34 = dma.vmem_to_hbm [thread:$0]  %s32, 256, %s1, [#allocation4]
    $region13: #{tpu_custom_call.1} parent=1 // pred_fallthru
      _
    // Predicated region
    $region14: #{tpu_custom_call.1} parent=1 // pred_check
      _
    $region15: #{tpu_custom_call.1} parent=1 // pred_check_branch
      %36 = sbr.rel (0) target = $region17
    $region16: #{tpu_custom_call.1} parent=1 // pred_region
      %37 = dma.done [#allocation4], 256
    $region17: #{tpu_custom_call.1} parent=1 // pred_fallthru
      _
    %38 = vsyncpa [#allocation3], 1
    %39 = vsyncpa [#allocation4], 1

</llo_original>
